<compile_context>
chip_gen: v7x
topology: tpu7x:2x2x1
jax: 0.10.0
libtpu: 0.0.40
codegen_flags: <defaults>
</compile_context>

<pallas_src>
import jax
import jax.numpy as jnp
from jax.experimental import pallas as pl
from jax.experimental.pallas import tpu as pltpu


def _round_up(n, m):
    return (n + m - 1) // m * m


def d_kernel(x_ref, c_ref, w1a_ref, w1b_ref, b1_ref, w2_ref, b2_ref, out_ref):
    # First linear layer with the concat fused via split weights (MXU, f32 acc).
    h = jnp.dot(x_ref[...], w1a_ref[...], preferred_element_type=jnp.float32)
    h = h + jnp.dot(c_ref[...], w1b_ref[...], preferred_element_type=jnp.float32)
    h = jnp.maximum(h + b1_ref[...], 0.0)                       # bias + ReLU (VPU)

    # Dropout(0.3): identity in eval mode.
    # TODO(synk): train-mode dropout needs pltpu.prng_* + 1/(1-p) scaling.

    # Second linear layer (out_features = 1): VPU multiply + lane reduction
    # instead of an N=1 matmul; b2 is a scalar read from SMEM.
    o = jnp.sum(h * w2_ref[...], axis=-1) + b2_ref[0]           # (TB,)
    o = jnp.maximum(o, 0.0)                                     # final ReLU
    # Lane-dense store: (1, TB) block of the (1, B_pad) output.
    out_ref[...] = o.reshape(out_ref.shape).astype(out_ref.dtype)


def discriminator_forward(x, c, w1a, w1b, b1, w2_row, b2, *, tb=512):
    """x: (B, img_dim), c: (B, att_dim) -> out: (B, 1).

    w1a: (img_dim, hid), w1b: (att_dim, hid)  -- split of W1^T
    b1 : (1, hid)
    w2_row: (1, hid)  -- PyTorch Linear(hid, 1).weight layout
    b2 : (1,)
    tb : batch tile (multiple of 128).  Default 512 fits comfortably in the
         scoped-VMEM default on v5e/v6e/v7x; raise (with
         CompilerParams(vmem_limit_bytes=...)) for bigger tiles on v5e/v6e.
    """
    B, img_dim = x.shape
    _, att_dim = c.shape
    hid = w1a.shape[1]

    # Pad the batch so the lane-dense output blocks are full 128-lane multiples.
    B_pad = _round_up(B, 128)
    tb = min(tb, B_pad)
    B_pad = _round_up(B_pad, tb)
    if B_pad != B:
        x = jnp.pad(x, ((0, B_pad - B), (0, 0)))
        c = jnp.pad(c, ((0, B_pad - B), (0, 0)))
    num_tiles = B_pad // tb

    out = pl.pallas_call(
        d_kernel,
        out_shape=jax.ShapeDtypeStruct((1, B_pad), jnp.float32),
        grid=(num_tiles,),
        in_specs=[
            # Batch-tiled activations (pipelined / double-buffered by Pallas).
            pl.BlockSpec((tb, img_dim), lambda i: (i, 0)),
            pl.BlockSpec((tb, att_dim), lambda i: (i, 0)),
            # Resident weights / biases (constant index maps).
            pl.BlockSpec((img_dim, hid), lambda i: (0, 0)),
            pl.BlockSpec((att_dim, hid), lambda i: (0, 0)),
            pl.BlockSpec((1, hid), lambda i: (0, 0)),
            pl.BlockSpec((1, hid), lambda i: (0, 0)),
            # Scalar bias of the second layer lives in SMEM.
            pl.BlockSpec(memory_space=pltpu.MemorySpace.SMEM),
        ],
        out_specs=pl.BlockSpec((1, tb), lambda i: (0, i)),
        compiler_params=pltpu.CompilerParams(
            dimension_semantics=("parallel",)),
    )(x, c, w1a, w1b, b1, w2_row, b2)

    # Back to the module's (B, 1) layout (drop batch padding).
    return out.reshape(B_pad)[:B].reshape(B, 1)


if __name__ == "__main__":
    # Small shapes consistent with the module's forward.
    batch = 8
    img_dim = 16
    att_dim = 16
    hid_dim = 32
    in_dim = img_dim + att_dim

    key = jax.random.PRNGKey(0)
    kx, kc, kw1, kb1, kw2, kb2 = jax.random.split(key, 6)

    x = jax.random.normal(kx, (batch, img_dim), dtype=jnp.float32)
    c = jax.random.normal(kc, (batch, att_dim), dtype=jnp.float32)

    # Deterministic parameter init (PyTorch-style uniform bounds).
    bound1 = 1.0 / (in_dim ** 0.5)
    w1 = jax.random.uniform(kw1, (in_dim, hid_dim), jnp.float32, -bound1, bound1)
    b1 = jax.random.uniform(kb1, (1, hid_dim), jnp.float32, -bound1, bound1)
    bound2 = 1.0 / (hid_dim ** 0.5)
    w2_row = jax.random.uniform(kw2, (1, hid_dim), jnp.float32, -bound2, bound2)
    b2 = jax.random.uniform(kb2, (1,), jnp.float32, -bound2, bound2)

    # Split W1 once (outside the hot path) so the kernel fuses the concat.
    w1a, w1b = w1[:img_dim], w1[img_dim:]

    out = discriminator_forward(x, c, w1a, w1b, b1, w2_row, b2)
    out = jax.block_until_ready(out)

    # Reference in plain JAX (eval-mode dropout == identity).
    inputs = jnp.concatenate([x, c], axis=1)
    h_ref = jnp.maximum(inputs @ w1 + b1, 0.0)
    ref = jnp.maximum(h_ref @ w2_row.T + b2, 0.0)

    assert out.shape == (batch, 1)
    assert jnp.allclose(out, ref, atol=1e-5, rtol=1e-5), float(
        jnp.max(jnp.abs(out - ref)))

    print("KERNEL_OK")
</pallas_src>

<mosaic_0001>
module attributes {stable_mosaic.version = 11 : i64} {
  func.func @d_kernel(%arg0: i32, %arg1: memref<128x16xf32, #tpu.memory_space<vmem>>, %arg2: memref<128x16xf32, #tpu.memory_space<vmem>>, %arg3: memref<16x32xf32, #tpu.memory_space<vmem>>, %arg4: memref<16x32xf32, #tpu.memory_space<vmem>>, %arg5: memref<1x32xf32, #tpu.memory_space<vmem>>, %arg6: memref<1x32xf32, #tpu.memory_space<vmem>>, %arg7: memref<1xf32, #tpu.memory_space<smem>>, %arg8: memref<1x128xf32, #tpu.memory_space<vmem>>) attributes {dimension_semantics = [#tpu.dimension_semantics<parallel>], iteration_bounds = array<i64: 1>, scalar_prefetch = 0 : i64, scratch_operands = 0 : i64, tpu.core_type = #tpu.core_type<tc>, window_params = [{transform_indices = @transform_0, window_bounds = array<i64: 128, 16>}, {transform_indices = @transform_1, window_bounds = array<i64: 128, 16>}, {pipeline_mode = #tpu.pipeline_mode<synchronous>, transform_indices = @transform_2, window_bounds = array<i64: 16, 32>}, {pipeline_mode = #tpu.pipeline_mode<synchronous>, transform_indices = @transform_3, window_bounds = array<i64: 16, 32>}, {pipeline_mode = #tpu.pipeline_mode<synchronous>, transform_indices = @transform_4, window_bounds = array<i64: 1, 32>}, {pipeline_mode = #tpu.pipeline_mode<synchronous>, transform_indices = @transform_5, window_bounds = array<i64: 1, 32>}, {transform_indices = @transform_6, window_bounds = array<i64: 1>}, {transform_indices = @transform_7, window_bounds = array<i64: 1, 128>}]} {
    %c0 = arith.constant 0 : index
    %c0_0 = arith.constant 0 : index
    %0 = vector.load %arg1[%c0, %c0_0] : memref<128x16xf32, #tpu.memory_space<vmem>>, vector<128x16xf32>
    %c0_1 = arith.constant 0 : index
    %c0_2 = arith.constant 0 : index
    %1 = vector.load %arg3[%c0_1, %c0_2] : memref<16x32xf32, #tpu.memory_space<vmem>>, vector<16x32xf32>
    %cst = arith.constant dense<0.000000e+00> : vector<128x32xf32>
    %2 = tpu.matmul %0, %1, %cst {dimension_numbers = #tpu.dot_dimension_numbers<[1], [0], [0], [1], [0, 0, 1, 1], [], []>} : vector<128x16xf32>, vector<16x32xf32>, vector<128x32xf32> -> vector<128x32xf32>
    %c0_3 = arith.constant 0 : index
    %c0_4 = arith.constant 0 : index
    %3 = vector.load %arg2[%c0_3, %c0_4] : memref<128x16xf32, #tpu.memory_space<vmem>>, vector<128x16xf32>
    %c0_5 = arith.constant 0 : index
    %c0_6 = arith.constant 0 : index
    %4 = vector.load %arg4[%c0_5, %c0_6] : memref<16x32xf32, #tpu.memory_space<vmem>>, vector<16x32xf32>
    %cst_7 = arith.constant dense<0.000000e+00> : vector<128x32xf32>
    %5 = tpu.matmul %3, %4, %cst_7 {dimension_numbers = #tpu.dot_dimension_numbers<[1], [0], [0], [1], [0, 0, 1, 1], [], []>} : vector<128x16xf32>, vector<16x32xf32>, vector<128x32xf32> -> vector<128x32xf32>
    %6 = arith.addf %2, %5 : vector<128x32xf32>
    %c0_8 = arith.constant 0 : index
    %c0_9 = arith.constant 0 : index
    %7 = vector.load %arg5[%c0_8, %c0_9] : memref<1x32xf32, #tpu.memory_space<vmem>>, vector<1x32xf32>
    %8 = vector.broadcast %7 : vector<1x32xf32> to vector<128x32xf32>
    %9 = arith.addf %6, %8 : vector<128x32xf32>
    %cst_10 = arith.constant 0.000000e+00 : f32
    %10 = vector.broadcast %cst_10 : f32 to vector<128x32xf32>
    %11 = arith.maximumf %9, %10 : vector<128x32xf32>
    %c0_11 = arith.constant 0 : index
    %c0_12 = arith.constant 0 : index
    %12 = vector.load %arg6[%c0_11, %c0_12] : memref<1x32xf32, #tpu.memory_space<vmem>>, vector<1x32xf32>
    %13 = vector.broadcast %12 : vector<1x32xf32> to vector<128x32xf32>
    %14 = arith.mulf %11, %13 : vector<128x32xf32>
    %cst_13 = arith.constant dense<0.000000e+00> : vector<128xf32>
    %15 = vector.multi_reduction <add>, %14, %cst_13 [1] : vector<128x32xf32> to vector<128xf32>
    %c0_14 = arith.constant 0 : index
    %16 = memref.load %arg7[%c0_14] : memref<1xf32, #tpu.memory_space<smem>>
    %17 = vector.broadcast %16 : f32 to vector<128xf32>
    %18 = arith.addf %15, %17 : vector<128xf32>
    %cst_15 = arith.constant 0.000000e+00 : f32
    %19 = vector.broadcast %cst_15 : f32 to vector<128xf32>
    %20 = arith.maximumf %18, %19 : vector<128xf32>
    %21 = vector.shape_cast %20 : vector<128xf32> to vector<1x128xf32>
    %c0_16 = arith.constant 0 : index
    %c0_17 = arith.constant 0 : index
    %22 = vector.load %arg8[%c0_16, %c0_17] : memref<1x128xf32, #tpu.memory_space<vmem>>, vector<1x128xf32>
    tpu.vector_store %arg8[%c0_16, %c0_17], %21 {strides = array<i32>} : memref<1x128xf32, #tpu.memory_space<vmem>>, vector<1x128xf32>,
    return
  }
  func.func @transform_0(%arg0: i32) -> (i32, i32) {
    %c0_i32 = arith.constant 0 : i32
    %c0_i32_0 = arith.constant 0 : i32
    return %arg0, %c0_i32 : i32, i32
  }
  func.func @transform_1(%arg0: i32) -> (i32, i32) {
    %c0_i32 = arith.constant 0 : i32
    %c0_i32_0 = arith.constant 0 : i32
    return %arg0, %c0_i32 : i32, i32
  }
  func.func @transform_2(%arg0: i32) -> (i32, i32) {
    %c0_i32 = arith.constant 0 : i32
    %c0_i32_0 = arith.constant 0 : i32
    %c0_i32_1 = arith.constant 0 : i32
    return %c0_i32, %c0_i32_0 : i32, i32
  }
  func.func @transform_3(%arg0: i32) -> (i32, i32) {
    %c0_i32 = arith.constant 0 : i32
    %c0_i32_0 = arith.constant 0 : i32
    %c0_i32_1 = arith.constant 0 : i32
    return %c0_i32, %c0_i32_0 : i32, i32
  }
  func.func @transform_4(%arg0: i32) -> (i32, i32) {
    %c0_i32 = arith.constant 0 : i32
    %c0_i32_0 = arith.constant 0 : i32
    %c0_i32_1 = arith.constant 0 : i32
    return %c0_i32, %c0_i32_0 : i32, i32
  }
  func.func @transform_5(%arg0: i32) -> (i32, i32) {
    %c0_i32 = arith.constant 0 : i32
    %c0_i32_0 = arith.constant 0 : i32
    %c0_i32_1 = arith.constant 0 : i32
    return %c0_i32, %c0_i32_0 : i32, i32
  }
  func.func @transform_6(%arg0: i32) -> i32 {
    %c0_i32 = arith.constant 0 : i32
    %c0_i32_0 = arith.constant 0 : i32
    return %c0_i32 : i32
  }
  func.func @transform_7(%arg0: i32) -> (i32, i32) {
    %c0_i32 = arith.constant 0 : i32
    %c0_i32_0 = arith.constant 0 : i32
    return %c0_i32, %arg0 : i32, i32
  }
}

</mosaic_0001>

<llo_original>
// kernel: tpu_custom_call.1
$region0: #{tpu_custom_call.1}
  #allocation0 [shape = 'u32[]', space=smem, size = 0x4, offset = 0x4, fixed_abs, tag = 'smem constant byte address 0x4 - core index']
  #allocation1 [shape = 'u32[144,128]{1,0:T(1,128)}', space=vmem, size = 0x12000, scoped, tag = 'internal scratch']
  #allocation2 [shape = 'f32[1]{0:T(128)S(6)}', space=smem, size = 0x200, scoped, tag = 'scoped memory for tpu_custom_call.1']
  %s0 = inlined_call_operand.vmem [shape: f32[128,16], index: 0, kind: input, shape index: {}]
  %s1 = inlined_call_operand.vmem [shape: f32[128,16], index: 1, kind: input, shape index: {}]
  %s2 = inlined_call_operand.vmem [shape: f32[16,32], index: 2, kind: input, shape index: {}]
  %s3 = inlined_call_operand.vmem [shape: f32[16,32], index: 3, kind: input, shape index: {}]
  %s4 = inlined_call_operand.vmem [shape: f32[1,32], index: 4, kind: input, shape index: {}]
  %s5 = inlined_call_operand.vmem [shape: f32[1,32], index: 5, kind: input, shape index: {}]
  %s6 = inlined_call_operand.<no memory space> [shape: f32[1], index: 6, kind: input, shape index: {}]
  %s7 = inlined_call_operand.hbm [shape: f32[1,128], index: 7, kind: output, shape index: {}]
  %s8 = sld [smem:[#allocation0]]
  $region38: #{tpu_custom_call.1} parent=0
    _
  %s10 = ssub.s32 1, %s8
  %s11 = scalar_select 0, %s10, %s8
  %12 = sst [smem:[#allocation2]] %s6
  $region1: #{tpu_custom_call.1} parent=0
    #allocation3 [shape = 'u8[512]{0}', space=vmem, size = 0x400, scoped, tag = 'output window, operand 0, single buffered']
    #allocation4 [shape = 's32[1]{0}', space=sflag, size = 0x4, scoped, tag = 'scoped memory for tpu_custom_call.1']
    %13 = vsyncpa [#allocation4], 0
    // Predicated region
    $region2: #{tpu_custom_call.1} parent=1 // pred_check
      _
    $region3: #{tpu_custom_call.1} parent=1 // pred_check_branch
      %15 = sbr.rel (0) target = $region5
    $region4: #{tpu_custom_call.1} parent=1 // pred_region
      _
    $region5: #{tpu_custom_call.1} parent=1 // pred_fallthru
      _
    // Predicated region
    $region6: #{tpu_custom_call.1} parent=1 // pred_check
      _
    $region7: #{tpu_custom_call.1} parent=1 // pred_check_branch
      %17 = sbr.rel (0) target = $region9
    $region8: #{tpu_custom_call.1} parent=1 // pred_region
      _
    $region9: #{tpu_custom_call.1} parent=1 // pred_fallthru
      _
    // Predicated region
    $region10: #{tpu_custom_call.1} parent=1 // pred_check
      _
    $region11: #{tpu_custom_call.1} parent=1 // pred_check_branch
      %19 = sbr.rel (0) target = $region13
    $region12: #{tpu_custom_call.1} parent=1 // pred_region
      _
    $region13: #{tpu_custom_call.1} parent=1 // pred_fallthru
      _
    // Predicated region
    $region14: #{tpu_custom_call.1} parent=1 // pred_check
      _
    $region15: #{tpu_custom_call.1} parent=1 // pred_check_branch
      %21 = sbr.rel (0) target = $region17
    $region16: #{tpu_custom_call.1} parent=1 // pred_region
      _
    $region17: #{tpu_custom_call.1} parent=1 // pred_fallthru
      _
    // Predicated region
    $region18: #{tpu_custom_call.1} parent=1 // pred_check
      _
    $region19: #{tpu_custom_call.1} parent=1 // pred_check_branch
      %23 = sbr.rel (0) target = $region21
    $region20: #{tpu_custom_call.1} parent=1 // pred_region
      _
    $region21: #{tpu_custom_call.1} parent=1 // pred_fallthru
      _
    // Predicated region
    $region22: #{tpu_custom_call.1} parent=1 // pred_check
      _
    $region23: #{tpu_custom_call.1} parent=1 // pred_check_branch
      %25 = sbr.rel (0) target = $region25
    $region24: #{tpu_custom_call.1} parent=1 // pred_region
      _
    $region25: #{tpu_custom_call.1} parent=1 // pred_fallthru
      _
    // Predicated region
    $region26: #{tpu_custom_call.1} parent=1 // pred_check
      _
    $region27: #{tpu_custom_call.1} parent=1 // pred_check_branch
      %27 = sbr.rel (0) target = $region29
    $region28: #{tpu_custom_call.1} parent=1 // pred_region
      _
    $region29: #{tpu_custom_call.1} parent=1 // pred_fallthru
      _
    %v28 = vld [vmem:[%s0] sm:$0xff]
    %v29 = vld [vmem:[%s0 + $0x8] sm:$0xff]
    %v30 = vld [vmem:[%s0 + $0x10] sm:$0xff]
    %v31 = vld [vmem:[%s0 + $0x18] sm:$0xff]
    %v32 = vld [vmem:[%s0 + $0x20] sm:$0xff]
    %v33 = vld [vmem:[%s0 + $0x28] sm:$0xff]
    %v34 = vld [vmem:[%s0 + $0x30] sm:$0xff]
    %v35 = vld [vmem:[%s0 + $0x38] sm:$0xff]
    %v36 = vld [vmem:[%s0 + $0x40] sm:$0xff]
    %v37 = vld [vmem:[%s0 + $0x48] sm:$0xff]
    %v38 = vld [vmem:[%s0 + $0x50] sm:$0xff]
    %v39 = vld [vmem:[%s0 + $0x58] sm:$0xff]
    %v40 = vld [vmem:[%s0 + $0x60] sm:$0xff]
    %v41 = vld [vmem:[%s0 + $0x68] sm:$0xff]
    %v42 = vld [vmem:[%s0 + $0x70] sm:$0xff]
    %v43 = vld [vmem:[%s0 + $0x78] sm:$0xff]
    %v44 = vld [vmem:[%s2] sm:$0xff]
    %v45 = vld [vmem:[%s2 + $0x8] sm:$0xff]
    %v46 = vld [vmem:[%s1] sm:$0xff]
    %v47 = vld [vmem:[%s1 + $0x8] sm:$0xff]
    %v48 = vld [vmem:[%s1 + $0x10] sm:$0xff]
    %v49 = vld [vmem:[%s1 + $0x18] sm:$0xff]
    %v50 = vld [vmem:[%s1 + $0x20] sm:$0xff]
    %v51 = vld [vmem:[%s1 + $0x28] sm:$0xff]
    %v52 = vld [vmem:[%s1 + $0x30] sm:$0xff]
    %v53 = vld [vmem:[%s1 + $0x38] sm:$0xff]
    %v54 = vld [vmem:[%s1 + $0x40] sm:$0xff]
    %v55 = vld [vmem:[%s1 + $0x48] sm:$0xff]
    %v56 = vld [vmem:[%s1 + $0x50] sm:$0xff]
    %v57 = vld [vmem:[%s1 + $0x58] sm:$0xff]
    %v58 = vld [vmem:[%s1 + $0x60] sm:$0xff]
    %v59 = vld [vmem:[%s1 + $0x68] sm:$0xff]
    %v60 = vld [vmem:[%s1 + $0x70] sm:$0xff]
    %v61 = vld [vmem:[%s1 + $0x78] sm:$0xff]
    %v62 = vld [vmem:[%s3] sm:$0xff]
    %v63 = vld [vmem:[%s3 + $0x8] sm:$0xff]
    %vm64 = vcmask 130048
    %v66 = vsel %vm64, %v46, 0
    %v69 = vsel %vm64, %v47, 0
    %v72 = vsel %vm64, %v48, 0
    %v75 = vsel %vm64, %v49, 0
    %v78 = vsel %vm64, %v50, 0
    %v81 = vsel %vm64, %v51, 0
    %v84 = vsel %vm64, %v52, 0
    %v87 = vsel %vm64, %v53, 0
    %v90 = vsel %vm64, %v54, 0
    %v93 = vsel %vm64, %v55, 0
    %v96 = vsel %vm64, %v56, 0
    %v99 = vsel %vm64, %v57, 0
    %v102 = vsel %vm64, %v58, 0
    %v105 = vsel %vm64, %v59, 0
    %v108 = vsel %vm64, %v60, 0
    %v111 = vsel %vm64, %v61, 0
    %113 = vmatprep.subr.mxu0 0.0
    %114 = vmatpush1.msra.mxu0 %v62
    %115 = vmatprep.subr.mxu0 0.0
    %116 = vmatpush1.msra.mxu0 %v63
    %117 = vmatprep.subr.mxu0 0.0
    %118 = vmatpush1.msra.mxu0 0.0
    %119 = vmatprep.subr.mxu0 0.0
    %120 = vmatpush1.msra.mxu0 0.0
    %121 = vmatprep.subr.mxu0 0.0
    %122 = vmatpush1.msra.mxu0 0.0
    %123 = vmatprep.subr.mxu0 0.0
    %124 = vmatpush1.msra.mxu0 0.0
    %125 = vmatprep.subr.mxu0 0.0
    %126 = vmatpush1.msra.mxu0 0.0
    %127 = vmatprep.subr.mxu0 0.0
    %128 = vmatpush1.msra.mxu0 0.0
    %129 = vmatprep.subr.mxu0 0.0
    %130 = vmatpush1.msra.mxu0 0.0
    %131 = vmatprep.subr.mxu0 0.0
    %132 = vmatpush1.msra.mxu0 0.0
    %133 = vmatprep.subr.mxu0 0.0
    %134 = vmatpush1.msra.mxu0 0.0
    %135 = vmatprep.subr.mxu0 0.0
    %136 = vmatpush1.msra.mxu0 0.0
    %137 = vmatprep.subr.mxu0 0.0
    %138 = vmatpush1.msra.mxu0 0.0
    %139 = vmatprep.subr.mxu0 0.0
    %140 = vmatpush1.msra.mxu0 0.0
    %141 = vmatprep.subr.mxu0 0.0
    %142 = vmatpush1.msra.mxu0 0.0
    %143 = vmatprep.subr.mxu0 0.0
    %144 = vmatpush1.msra.mxu0 0.0
    %145 = vmatprep.subr.mxu0 0.0
    %146 = vmatpush1.msra.mxu0 0.0
    %147 = vmatprep.subr.mxu0 0.0
    %148 = vmatpush1.msra.mxu0 0.0
    %149 = vmatprep.subr.mxu0 0.0
    %150 = vmatpush1.msra.mxu0 0.0
    %151 = vmatprep.subr.mxu0 0.0
    %152 = vmatpush1.msra.mxu0 0.0
    %153 = vmatprep.subr.mxu0 0.0
    %154 = vmatpush1.msra.mxu0 0.0
    %155 = vmatprep.subr.mxu0 0.0
    %156 = vmatpush1.msra.mxu0 0.0
    %157 = vmatprep.subr.mxu0 0.0
    %158 = vmatpush1.msra.mxu0 0.0
    %159 = vmatprep.subr.mxu0 0.0
    %160 = vmatpush1.msra.mxu0 0.0
    %161 = vmatprep.subr.mxu0 0.0
    %162 = vmatpush1.msra.mxu0 0.0
    %163 = vmatprep.subr.mxu0 0.0
    %164 = vmatpush1.msra.mxu0 0.0
    %165 = vmatprep.subr.mxu0 0.0
    %166 = vmatpush1.msra.mxu0 0.0
    %167 = vmatprep.subr.mxu0 0.0
    %168 = vmatpush1.msra.mxu0 0.0
    %169 = vmatprep.subr.mxu0 0.0
    %170 = vmatpush1.msra.mxu0 0.0
    %171 = vmatprep.subr.mxu0 0.0
    %172 = vmatpush1.msra.mxu0 0.0
    %173 = vmatprep.subr.mxu0 0.0
    %174 = vmatpush1.msra.mxu0 0.0
    %175 = vmatprep.subr.mxu0 0.0
    %176 = vmatpush1.msra.mxu0 0.0
    %177 = vmatprep.mubr.f32.mxu0 0.0
    %178 = vmatmul.mubr.f32.gmra.mrb[0].mxu0 %v66
    %v179 = vpop.f32.mrb[0].mxu0
    %v180 = vadd.f32 0.0, %v179
    %v181 = vpop.f32.mrb[0].mxu0
    %182 = vmatprep.mubr.f32.mxu0 0.0
    %183 = vmatmul.mubr.f32.gmra.mrb[0].mxu0 %v69
    %v184 = vpop.f32.mrb[0].mxu0
    %v185 = vadd.f32 0.0, %v184
    %v186 = vpop.f32.mrb[0].mxu0
    %187 = vmatprep.mubr.f32.mxu0 0.0
    %188 = vmatmul.mubr.f32.gmra.mrb[0].mxu0 %v72
    %v189 = vpop.f32.mrb[0].mxu0
    %v190 = vadd.f32 0.0, %v189
    %v191 = vpop.f32.mrb[0].mxu0
    %192 = vmatprep.mubr.f32.mxu0 0.0
    %193 = vmatmul.mubr.f32.gmra.mrb[0].mxu0 %v75
    %v194 = vpop.f32.mrb[0].mxu0
    %v195 = vadd.f32 0.0, %v194
    %v196 = vpop.f32.mrb[0].mxu0
    %197 = vmatprep.mubr.f32.mxu0 0.0
    %198 = vmatmul.mubr.f32.gmra.mrb[0].mxu0 %v78
    %v199 = vpop.f32.mrb[0].mxu0
    %v200 = vadd.f32 0.0, %v199
    %v201 = vpop.f32.mrb[0].mxu0
    %202 = vmatprep.mubr.f32.mxu0 0.0
    %203 = vmatmul.mubr.f32.gmra.mrb[0].mxu0 %v81
    %v204 = vpop.f32.mrb[0].mxu0
    %v205 = vadd.f32 0.0, %v204
    %v206 = vpop.f32.mrb[0].mxu0
    %207 = vmatprep.mubr.f32.mxu0 0.0
    %208 = vmatmul.mubr.f32.gmra.mrb[0].mxu0 %v84
    %v209 = vpop.f32.mrb[0].mxu0
    %v210 = vadd.f32 0.0, %v209
    %v211 = vpop.f32.mrb[0].mxu0
    %212 = vmatprep.mubr.f32.mxu0 0.0
    %213 = vmatmul.mubr.f32.gmra.mrb[0].mxu0 %v87
    %v214 = vpop.f32.mrb[0].mxu0
    %v215 = vadd.f32 0.0, %v214
    %v216 = vpop.f32.mrb[0].mxu0
    %217 = vmatprep.mubr.f32.mxu0 0.0
    %218 = vmatmul.mubr.f32.gmra.mrb[0].mxu0 %v90
    %v219 = vpop.f32.mrb[0].mxu0
    %v220 = vadd.f32 0.0, %v219
    %v221 = vpop.f32.mrb[0].mxu0
    %222 = vmatprep.mubr.f32.mxu0 0.0
    %223 = vmatmul.mubr.f32.gmra.mrb[0].mxu0 %v93
    %v224 = vpop.f32.mrb[0].mxu0
    %v225 = vadd.f32 0.0, %v224
    %v226 = vpop.f32.mrb[0].mxu0
    %227 = vmatprep.mubr.f32.mxu0 0.0
    %228 = vmatmul.mubr.f32.gmra.mrb[0].mxu0 %v96
    %v229 = vpop.f32.mrb[0].mxu0
    %v230 = vadd.f32 0.0, %v229
    %v231 = vpop.f32.mrb[0].mxu0
    %232 = vmatprep.mubr.f32.mxu0 0.0
    %233 = vmatmul.mubr.f32.gmra.mrb[0].mxu0 %v99
    %v234 = vpop.f32.mrb[0].mxu0
    %v235 = vadd.f32 0.0, %v234
    %v236 = vpop.f32.mrb[0].mxu0
    %237 = vmatprep.mubr.f32.mxu0 0.0
    %238 = vmatmul.mubr.f32.gmra.mrb[0].mxu0 %v102
    %v239 = vpop.f32.mrb[0].mxu0
    %v240 = vadd.f32 0.0, %v239
    %v241 = vpop.f32.mrb[0].mxu0
    %242 = vmatprep.mubr.f32.mxu0 0.0
    %243 = vmatmul.mubr.f32.gmra.mrb[0].mxu0 %v105
    %v244 = vpop.f32.mrb[0].mxu0
    %v245 = vadd.f32 0.0, %v244
    %v246 = vpop.f32.mrb[0].mxu0
    %247 = vmatprep.mubr.f32.mxu0 0.0
    %248 = vmatmul.mubr.f32.gmra.mrb[0].mxu0 %v108
    %v249 = vpop.f32.mrb[0].mxu0
    %v250 = vadd.f32 0.0, %v249
    %v251 = vpop.f32.mrb[0].mxu0
    %252 = vmatprep.mubr.f32.mxu0 0.0
    %253 = vmatmul.mubr.f32.gmra.mrb[0].mxu0 %v111
    %v254 = vpop.f32.mrb[0].mxu0
    %v255 = vadd.f32 0.0, %v254
    %v256 = vpop.f32.mrb[0].mxu0
    %257 = vdwg.mxu0
    %v259 = vsel %vm64, %v28, 0
    %v262 = vsel %vm64, %v29, 0
    %v265 = vsel %vm64, %v30, 0
    %v268 = vsel %vm64, %v31, 0
    %v271 = vsel %vm64, %v32, 0
    %v274 = vsel %vm64, %v33, 0
    %v277 = vsel %vm64, %v34, 0
    %v280 = vsel %vm64, %v35, 0
    %v283 = vsel %vm64, %v36, 0
    %v286 = vsel %vm64, %v37, 0
    %v289 = vsel %vm64, %v38, 0
    %v292 = vsel %vm64, %v39, 0
    %v295 = vsel %vm64, %v40, 0
    %v298 = vsel %vm64, %v41, 0
    %v301 = vsel %vm64, %v42, 0
    %v304 = vsel %vm64, %v43, 0
    %306 = vmatprep.subr.mxu0 0.0
    %307 = vmatpush1.msra.mxu0 %v44
    %308 = vmatprep.subr.mxu0 0.0
    %309 = vmatpush1.msra.mxu0 %v45
    %310 = vmatprep.subr.mxu0 0.0
    %311 = vmatpush1.msra.mxu0 0.0
    %312 = vmatprep.subr.mxu0 0.0
    %313 = vmatpush1.msra.mxu0 0.0
    %314 = vmatprep.subr.mxu0 0.0
    %315 = vmatpush1.msra.mxu0 0.0
    %316 = vmatprep.subr.mxu0 0.0
    %317 = vmatpush1.msra.mxu0 0.0
    %318 = vmatprep.subr.mxu0 0.0
    %319 = vmatpush1.msra.mxu0 0.0
    %320 = vmatprep.subr.mxu0 0.0
    %321 = vmatpush1.msra.mxu0 0.0
    %322 = vmatprep.subr.mxu0 0.0
    %323 = vmatpush1.msra.mxu0 0.0
    %324 = vmatprep.subr.mxu0 0.0
    %325 = vmatpush1.msra.mxu0 0.0
    %326 = vmatprep.subr.mxu0 0.0
    %327 = vmatpush1.msra.mxu0 0.0
    %328 = vmatprep.subr.mxu0 0.0
    %329 = vmatpush1.msra.mxu0 0.0
    %330 = vmatprep.subr.mxu0 0.0
    %331 = vmatpush1.msra.mxu0 0.0
    %332 = vmatprep.subr.mxu0 0.0
    %333 = vmatpush1.msra.mxu0 0.0
    %334 = vmatprep.subr.mxu0 0.0
    %335 = vmatpush1.msra.mxu0 0.0
    %336 = vmatprep.subr.mxu0 0.0
    %337 = vmatpush1.msra.mxu0 0.0
    %338 = vmatprep.subr.mxu0 0.0
    %339 = vmatpush1.msra.mxu0 0.0
    %340 = vmatprep.subr.mxu0 0.0
    %341 = vmatpush1.msra.mxu0 0.0
    %342 = vmatprep.subr.mxu0 0.0
    %343 = vmatpush1.msra.mxu0 0.0
    %344 = vmatprep.subr.mxu0 0.0
    %345 = vmatpush1.msra.mxu0 0.0
    %346 = vmatprep.subr.mxu0 0.0
    %347 = vmatpush1.msra.mxu0 0.0
    %348 = vmatprep.subr.mxu0 0.0
    %349 = vmatpush1.msra.mxu0 0.0
    %350 = vmatprep.subr.mxu0 0.0
    %351 = vmatpush1.msra.mxu0 0.0
    %352 = vmatprep.subr.mxu0 0.0
    %353 = vmatpush1.msra.mxu0 0.0
    %354 = vmatprep.subr.mxu0 0.0
    %355 = vmatpush1.msra.mxu0 0.0
    %356 = vmatprep.subr.mxu0 0.0
    %357 = vmatpush1.msra.mxu0 0.0
    %358 = vmatprep.subr.mxu0 0.0
    %359 = vmatpush1.msra.mxu0 0.0
    %360 = vmatprep.subr.mxu0 0.0
    %361 = vmatpush1.msra.mxu0 0.0
    %362 = vmatprep.subr.mxu0 0.0
    %363 = vmatpush1.msra.mxu0 0.0
    %364 = vmatprep.subr.mxu0 0.0
    %365 = vmatpush1.msra.mxu0 0.0
    %366 = vmatprep.subr.mxu0 0.0
    %367 = vmatpush1.msra.mxu0 0.0
    %368 = vmatprep.subr.mxu0 0.0
    %369 = vmatpush1.msra.mxu0 0.0
    %370 = vmatprep.mubr.f32.mxu0 0.0
    %371 = vmatmul.mubr.f32.gmra.mrb[0].mxu0 %v259
    %v372 = vpop.f32.mrb[0].mxu0
    %v373 = vadd.f32 %v180, %v372
    %v374 = vpop.f32.mrb[0].mxu0
    %375 = vmatprep.mubr.f32.mxu0 0.0
    %376 = vmatmul.mubr.f32.gmra.mrb[0].mxu0 %v262
    %v377 = vpop.f32.mrb[0].mxu0
    %v378 = vadd.f32 %v185, %v377
    %v379 = vpop.f32.mrb[0].mxu0
    %380 = vmatprep.mubr.f32.mxu0 0.0
    %381 = vmatmul.mubr.f32.gmra.mrb[0].mxu0 %v265
    %v382 = vpop.f32.mrb[0].mxu0
    %v383 = vadd.f32 %v190, %v382
    %v384 = vpop.f32.mrb[0].mxu0
    %385 = vmatprep.mubr.f32.mxu0 0.0
    %386 = vmatmul.mubr.f32.gmra.mrb[0].mxu0 %v268
    %v387 = vpop.f32.mrb[0].mxu0
    %v388 = vadd.f32 %v195, %v387
    %v389 = vpop.f32.mrb[0].mxu0
    %390 = vmatprep.mubr.f32.mxu0 0.0
    %391 = vmatmul.mubr.f32.gmra.mrb[0].mxu0 %v271
    %v392 = vpop.f32.mrb[0].mxu0
    %v393 = vadd.f32 %v200, %v392
    %v394 = vpop.f32.mrb[0].mxu0
    %395 = vmatprep.mubr.f32.mxu0 0.0
    %396 = vmatmul.mubr.f32.gmra.mrb[0].mxu0 %v274
    %v397 = vpop.f32.mrb[0].mxu0
    %v398 = vadd.f32 %v205, %v397
    %v399 = vpop.f32.mrb[0].mxu0
    %400 = vmatprep.mubr.f32.mxu0 0.0
    %401 = vmatmul.mubr.f32.gmra.mrb[0].mxu0 %v277
    %v402 = vpop.f32.mrb[0].mxu0
    %v403 = vadd.f32 %v210, %v402
    %v404 = vpop.f32.mrb[0].mxu0
    %405 = vmatprep.mubr.f32.mxu0 0.0
    %406 = vmatmul.mubr.f32.gmra.mrb[0].mxu0 %v280
    %v407 = vpop.f32.mrb[0].mxu0
    %v408 = vadd.f32 %v215, %v407
    %v409 = vpop.f32.mrb[0].mxu0
    %410 = vmatprep.mubr.f32.mxu0 0.0
    %411 = vmatmul.mubr.f32.gmra.mrb[0].mxu0 %v283
    %v412 = vpop.f32.mrb[0].mxu0
    %v413 = vadd.f32 %v220, %v412
    %v414 = vpop.f32.mrb[0].mxu0
    %415 = vmatprep.mubr.f32.mxu0 0.0
    %416 = vmatmul.mubr.f32.gmra.mrb[0].mxu0 %v286
    %v417 = vpop.f32.mrb[0].mxu0
    %v418 = vadd.f32 %v225, %v417
    %v419 = vpop.f32.mrb[0].mxu0
    %420 = vmatprep.mubr.f32.mxu0 0.0
    %421 = vmatmul.mubr.f32.gmra.mrb[0].mxu0 %v289
    %v422 = vpop.f32.mrb[0].mxu0
    %v423 = vadd.f32 %v230, %v422
    %v424 = vpop.f32.mrb[0].mxu0
    %425 = vmatprep.mubr.f32.mxu0 0.0
    %426 = vmatmul.mubr.f32.gmra.mrb[0].mxu0 %v292
    %v427 = vpop.f32.mrb[0].mxu0
    %v428 = vadd.f32 %v235, %v427
    %v429 = vpop.f32.mrb[0].mxu0
    %430 = vmatprep.mubr.f32.mxu0 0.0
    %431 = vmatmul.mubr.f32.gmra.mrb[0].mxu0 %v295
    %v432 = vpop.f32.mrb[0].mxu0
    %v433 = vadd.f32 %v240, %v432
    %v434 = vpop.f32.mrb[0].mxu0
    %435 = vmatprep.mubr.f32.mxu0 0.0
    %436 = vmatmul.mubr.f32.gmra.mrb[0].mxu0 %v298
    %v437 = vpop.f32.mrb[0].mxu0
    %v438 = vadd.f32 %v245, %v437
    %v439 = vpop.f32.mrb[0].mxu0
    %440 = vmatprep.mubr.f32.mxu0 0.0
    %441 = vmatmul.mubr.f32.gmra.mrb[0].mxu0 %v301
    %v442 = vpop.f32.mrb[0].mxu0
    %v443 = vadd.f32 %v250, %v442
    %v444 = vpop.f32.mrb[0].mxu0
    %445 = vmatprep.mubr.f32.mxu0 0.0
    %446 = vmatmul.mubr.f32.gmra.mrb[0].mxu0 %v304
    %v447 = vpop.f32.mrb[0].mxu0
    %v448 = vadd.f32 %v255, %v447
    %v449 = vpop.f32.mrb[0].mxu0
    %450 = vdwg.mxu0
    %v451 = vld [vmem:[%s4] sm:$0x1]
    %v453 = vlaneseq
    %v454 = vshrl.u32 %v453, 7
    %v455 = vsub.s32 0, %v454
    %v456 = vrot.slane %v451, %v455
    %v458 = vadd.f32 %v373, %v456
    %v459 = vadd.f32 %v378, %v456
    %v460 = vadd.f32 %v383, %v456
    %v461 = vadd.f32 %v388, %v456
    %v462 = vadd.f32 %v393, %v456
    %v463 = vadd.f32 %v398, %v456
    %v464 = vadd.f32 %v403, %v456
    %v465 = vadd.f32 %v408, %v456
    %v466 = vadd.f32 %v413, %v456
    %v467 = vadd.f32 %v418, %v456
    %v468 = vadd.f32 %v423, %v456
    %v469 = vadd.f32 %v428, %v456
    %v470 = vadd.f32 %v433, %v456
    %v471 = vadd.f32 %v438, %v456
    %v472 = vadd.f32 %v443, %v456
    %v473 = vadd.f32 %v448, %v456
    %v474 = vmax.f32 %v458, 0.0
    %v475 = vmax.f32 %v459, 0.0
    %v476 = vmax.f32 %v460, 0.0
    %v477 = vmax.f32 %v461, 0.0
    %v478 = vmax.f32 %v462, 0.0
    %v479 = vmax.f32 %v463, 0.0
    %v480 = vmax.f32 %v464, 0.0
    %v481 = vmax.f32 %v465, 0.0
    %v482 = vmax.f32 %v466, 0.0
    %v483 = vmax.f32 %v467, 0.0
    %v484 = vmax.f32 %v468, 0.0
    %v485 = vmax.f32 %v469, 0.0
    %v486 = vmax.f32 %v470, 0.0
    %v487 = vmax.f32 %v471, 0.0
    %v488 = vmax.f32 %v472, 0.0
    %v489 = vmax.f32 %v473, 0.0
    %v490 = vld [vmem:[%s5] sm:$0x1]
    %v492 = vlaneseq
    %v493 = vshrl.u32 %v492, 7
    %v494 = vsub.s32 0, %v493
    %v495 = vrot.slane %v490, %v494
    %v497 = vmul.f32 %v474, %v495
    %v498 = vmul.f32 %v475, %v495
    %v499 = vmul.f32 %v476, %v495
    %v500 = vmul.f32 %v477, %v495
    %v501 = vmul.f32 %v478, %v495
    %v502 = vmul.f32 %v479, %v495
    %v503 = vmul.f32 %v480, %v495
    %v504 = vmul.f32 %v481, %v495
    %v505 = vmul.f32 %v482, %v495
    %v506 = vmul.f32 %v483, %v495
    %v507 = vmul.f32 %v484, %v495
    %v508 = vmul.f32 %v485, %v495
    %v509 = vmul.f32 %v486, %v495
    %v510 = vmul.f32 %v487, %v495
    %v511 = vmul.f32 %v488, %v495
    %v512 = vmul.f32 %v489, %v495
    %vm513 = vcmask 261120
    %v514 = vsel %vm513, %v497, 0.0
    %515 = vadd.xlane.f32.xlu0 %v514
    %v516 = vpop.xlane.xlu0 %515
    %v517 = vsel %vm513, %v498, 0.0
    %518 = vadd.xlane.f32.xlu0 %v517
    %v519 = vpop.xlane.xlu0 %518
    %v520 = vsel %vm513, %v499, 0.0
    %521 = vadd.xlane.f32.xlu0 %v520
    %v522 = vpop.xlane.xlu0 %521
    %v523 = vsel %vm513, %v500, 0.0
    %524 = vadd.xlane.f32.xlu0 %v523
    %v525 = vpop.xlane.xlu0 %524
    %v526 = vsel %vm513, %v501, 0.0
    %527 = vadd.xlane.f32.xlu0 %v526
    %v528 = vpop.xlane.xlu0 %527
    %v529 = vsel %vm513, %v502, 0.0
    %530 = vadd.xlane.f32.xlu0 %v529
    %v531 = vpop.xlane.xlu0 %530
    %v532 = vsel %vm513, %v503, 0.0
    %533 = vadd.xlane.f32.xlu0 %v532
    %v534 = vpop.xlane.xlu0 %533
    %v535 = vsel %vm513, %v504, 0.0
    %536 = vadd.xlane.f32.xlu0 %v535
    %v537 = vpop.xlane.xlu0 %536
    %v538 = vsel %vm513, %v505, 0.0
    %539 = vadd.xlane.f32.xlu0 %v538
    %v540 = vpop.xlane.xlu0 %539
    %v541 = vsel %vm513, %v506, 0.0
    %542 = vadd.xlane.f32.xlu0 %v541
    %v543 = vpop.xlane.xlu0 %542
    %v544 = vsel %vm513, %v507, 0.0
    %545 = vadd.xlane.f32.xlu0 %v544
    %v546 = vpop.xlane.xlu0 %545
    %v547 = vsel %vm513, %v508, 0.0
    %548 = vadd.xlane.f32.xlu0 %v547
    %v549 = vpop.xlane.xlu0 %548
    %v550 = vsel %vm513, %v509, 0.0
    %551 = vadd.xlane.f32.xlu0 %v550
    %v552 = vpop.xlane.xlu0 %551
    %v553 = vsel %vm513, %v510, 0.0
    %554 = vadd.xlane.f32.xlu0 %v553
    %v555 = vpop.xlane.xlu0 %554
    %v556 = vsel %vm513, %v511, 0.0
    %557 = vadd.xlane.f32.xlu0 %v556
    %v558 = vpop.xlane.xlu0 %557
    %v559 = vsel %vm513, %v512, 0.0
    %560 = vadd.xlane.f32.xlu0 %v559
    %v561 = vpop.xlane.xlu0 %560
    %s562 = sld [smem:[#allocation2]]
    %v563 = vstv %s562
    %v564 = vadd.f32 %v516, %v563
    %v565 = vadd.f32 %v519, %v563
    %v566 = vadd.f32 %v522, %v563
    %v567 = vadd.f32 %v525, %v563
    %v568 = vadd.f32 %v528, %v563
    %v569 = vadd.f32 %v531, %v563
    %v570 = vadd.f32 %v534, %v563
    %v571 = vadd.f32 %v537, %v563
    %v572 = vadd.f32 %v540, %v563
    %v573 = vadd.f32 %v543, %v563
    %v574 = vadd.f32 %v546, %v563
    %v575 = vadd.f32 %v549, %v563
    %v576 = vadd.f32 %v552, %v563
    %v577 = vadd.f32 %v555, %v563
    %v578 = vadd.f32 %v558, %v563
    %v579 = vadd.f32 %v561, %v563
    %v580 = vmax.f32 %v564, 0.0
    %v581 = vmax.f32 %v565, 0.0
    %v582 = vmax.f32 %v566, 0.0
    %v583 = vmax.f32 %v567, 0.0
    %v584 = vmax.f32 %v568, 0.0
    %v585 = vmax.f32 %v569, 0.0
    %v586 = vmax.f32 %v570, 0.0
    %v587 = vmax.f32 %v571, 0.0
    %v588 = vmax.f32 %v572, 0.0
    %v589 = vmax.f32 %v573, 0.0
    %v590 = vmax.f32 %v574, 0.0
    %v591 = vmax.f32 %v575, 0.0
    %v592 = vmax.f32 %v576, 0.0
    %v593 = vmax.f32 %v577, 0.0
    %v594 = vmax.f32 %v578, 0.0
    %v595 = vmax.f32 %v579, 0.0
    %v612 = vlaneseq
    %v613 = vand.u32 %v612, 127
    %v614 = vlaneseq
    %v615 = vshrl.u32 %v614, 7
    %v616 = vsub.s32 %v613, %v615
    %v617 = vrot.slane %v580, %v616
    %v618 = vadd.s32 %v613, 4294967288
    %v619 = vlaneseq
    %v620 = vshrl.u32 %v619, 7
    %v621 = vsub.s32 %v618, %v620
    %v622 = vrot.slane %v581, %v621
    %vm623 = vcmask 130112
    %v624 = vsel %vm623, %v622, %v617
    %v625 = vadd.s32 %v613, 4294967280
    %v626 = vlaneseq
    %v627 = vshrl.u32 %v626, 7
    %v628 = vsub.s32 %v625, %v627
    %v629 = vrot.slane %v582, %v628
    %vm630 = vcmask 195712
    %v631 = vsel %vm630, %v629, %v624
    %v632 = vadd.s32 %v613, 4294967272
    %v633 = vlaneseq
    %v634 = vshrl.u32 %v633, 7
    %v635 = vsub.s32 %v632, %v634
    %v636 = vrot.slane %v583, %v635
    %vm637 = vcmask 261312
    %v638 = vsel %vm637, %v636, %v631
    %v639 = vadd.s32 %v613, 4294967264
    %v640 = vlaneseq
    %v641 = vshrl.u32 %v640, 7
    %v642 = vsub.s32 %v639, %v641
    %v643 = vrot.slane %v584, %v642
    %vm644 = vcmask 326912
    %v645 = vsel %vm644, %v643, %v638
    %v646 = vadd.s32 %v613, 4294967256
    %v647 = vlaneseq
    %v648 = vshrl.u32 %v647, 7
    %v649 = vsub.s32 %v646, %v648
    %v650 = vrot.slane %v585, %v649
    %vm651 = vcmask 392512
    %v652 = vsel %vm651, %v650, %v645
    %v653 = vadd.s32 %v613, 4294967248
    %v654 = vlaneseq
    %v655 = vshrl.u32 %v654, 7
    %v656 = vsub.s32 %v653, %v655
    %v657 = vrot.slane %v586, %v656
    %vm658 = vcmask 458112
    %v659 = vsel %vm658, %v657, %v652
    %v660 = vadd.s32 %v613, 4294967240
    %v661 = vlaneseq
    %v662 = vshrl.u32 %v661, 7
    %v663 = vsub.s32 %v660, %v662
    %v664 = vrot.slane %v587, %v663
    %vm665 = vcmask 523712
    %v666 = vsel %vm665, %v664, %v659
    %v667 = vadd.s32 %v613, 4294967232
    %v668 = vlaneseq
    %v669 = vshrl.u32 %v668, 7
    %v670 = vsub.s32 %v667, %v669
    %v671 = vrot.slane %v588, %v670
    %vm672 = vcmask 589312
    %v673 = vsel %vm672, %v671, %v666
    %v674 = vadd.s32 %v613, 4294967224
    %v675 = vlaneseq
    %v676 = vshrl.u32 %v675, 7
    %v677 = vsub.s32 %v674, %v676
    %v678 = vrot.slane %v589, %v677
    %vm679 = vcmask 654912
    %v680 = vsel %vm679, %v678, %v673
    %v681 = vadd.s32 %v613, 4294967216
    %v682 = vlaneseq
    %v683 = vshrl.u32 %v682, 7
    %v684 = vsub.s32 %v681, %v683
    %v685 = vrot.slane %v590, %v684
    %vm686 = vcmask 720512
    %v687 = vsel %vm686, %v685, %v680
    %v688 = vadd.s32 %v613, 4294967208
    %v689 = vlaneseq
    %v690 = vshrl.u32 %v689, 7
    %v691 = vsub.s32 %v688, %v690
    %v692 = vrot.slane %v591, %v691
    %vm693 = vcmask 786112
    %v694 = vsel %vm693, %v692, %v687
    %v695 = vadd.s32 %v613, 4294967200
    %v696 = vlaneseq
    %v697 = vshrl.u32 %v696, 7
    %v698 = vsub.s32 %v695, %v697
    %v699 = vrot.slane %v592, %v698
    %vm700 = vcmask 851712
    %v701 = vsel %vm700, %v699, %v694
    %v702 = vadd.s32 %v613, 4294967192
    %v703 = vlaneseq
    %v704 = vshrl.u32 %v703, 7
    %v705 = vsub.s32 %v702, %v704
    %v706 = vrot.slane %v593, %v705
    %vm707 = vcmask 917312
    %v708 = vsel %vm707, %v706, %v701
    %v709 = vadd.s32 %v613, 4294967184
    %v710 = vlaneseq
    %v711 = vshrl.u32 %v710, 7
    %v712 = vsub.s32 %v709, %v711
    %v713 = vrot.slane %v594, %v712
    %vm714 = vcmask 982912
    %v715 = vsel %vm714, %v713, %v708
    %v716 = vadd.s32 %v613, 4294967176
    %v717 = vlaneseq
    %v718 = vshrl.u32 %v717, 7
    %v719 = vsub.s32 %v716, %v718
    %v720 = vrot.slane %v595, %v719
    %vm721 = vcmask 1048512
    %v722 = vsel %vm721, %v720, %v715
    %724 = vst [vmem:[#allocation3] sm:$0x1] %v722
    // Predicated region
    $region30: #{tpu_custom_call.1} parent=1 // pred_check
      _
    $region31: #{tpu_custom_call.1} parent=1 // pred_check_branch
      %726 = sbr.rel (0) target = $region33
    $region32: #{tpu_custom_call.1} parent=1 // pred_region
      %s728 = ssub.s32 16, 16
      %729 = vsyncadd [#allocation4], %s728
      %s731 = sshll.u32 [#allocation3], 4
      %s732 = int_to_ptr.vmem [resolvable:$true] %s731
      %734 = dma.vmem_to_hbm [thread:$0]  %s732, 16, %s7, [#allocation4]
    $region33: #{tpu_custom_call.1} parent=1 // pred_fallthru
      _
    // Predicated region
    $region34: #{tpu_custom_call.1} parent=1 // pred_check
      _
    $region35: #{tpu_custom_call.1} parent=1 // pred_check_branch
      %736 = sbr.rel (0) target = $region37
    $region36: #{tpu_custom_call.1} parent=1 // pred_region
      %737 = dma.done [#allocation4], 16
    $region37: #{tpu_custom_call.1} parent=1 // pred_fallthru
      _
    %738 = vsyncpa [#allocation4], 1

</llo_original>
